<compile_context>
chip_gen: v5e
topology: v5e:2x2
jax: 0.10.0
libtpu: 0.0.40
codegen_flags: <defaults>
</compile_context>

<pallas_src>
import functools

import jax
import jax.numpy as jnp
from jax import lax
from jax.experimental import pallas as pl
from jax.experimental.pallas import tpu as pltpu


# ---------------------------------------------------------------------------
# helpers
# ---------------------------------------------------------------------------
def _cdiv(a, b):
    return -(-a // b)


@functools.lru_cache(maxsize=None)
def _bitcast_low_first(sub_bits):
    """True iff lax.bitcast_convert_type(u32 -> narrower)[..., 0] is the low bits.

    Evaluated eagerly on the default backend (even when called while tracing
    under jit) -- the same backend the final u32 -> dtype bitcast runs on.
    """
    with jax.ensure_compile_time_eval():
        if sub_bits == 16:
            probe = lax.bitcast_convert_type(jnp.uint32(0x00020001), jnp.uint16)
        else:
            probe = lax.bitcast_convert_type(jnp.uint32(0x04030201), jnp.uint8)
        return bool(int(probe[0]) == 1)


def _choose_tiles(Co, H, W, r, itemsize, budget_bytes=4 * 1024 * 1024):
    """Pick (Cot, Ht) so in+out bytes per grid step are ~budget_bytes.

    Ht is a multiple of the dtype's native sublane packing (or the full H);
    both axes may be ragged -- the grid uses cdiv and Pallas masks edge blocks.
    """
    align = 8 * max(1, 4 // itemsize)            # 8 f32 / 16 bf16,f16 / 32 int8
    per_row = 2 * r * r * W * itemsize           # in + out bytes per (channel, H-row)
    rows_cap = max(1, budget_bytes // per_row)
    if rows_cap >= H:
        ht = H
        cot = max(1, min(Co, budget_bytes // (per_row * H)))
    else:
        cot = 1
        ht = (rows_cap // align) * align
        if ht == 0:
            ht = min(align, H)                   # full-H only when H itself is tiny
    return cot, ht


def _split_for_megacore(B, Co, H, cot, ht, itemsize):
    """Guarantee >= 2 grid steps so both TensorCores get work on 2-TC chips."""
    align = 8 * max(1, 4 // itemsize)
    if B * _cdiv(Co, cot) * _cdiv(H, ht) > 1:
        return cot, ht
    if Co > 1:
        return _cdiv(Co, 2), ht
    if H >= 2 * align:
        return cot, max(align, ((H // 2) // align) * align)
    return cot, ht


# ---------------------------------------------------------------------------
# kernels
# ---------------------------------------------------------------------------
def _ps_packed_kernel(x_ref, o_ref, *, r, sub_bits, low_first):
    # x_ref: (1, Cot, r, r, Ht, W)   dtype with r * itemsize == 4 bytes
    # o_ref: (1, Cot, Ht*r, W)       uint32 -- a free row-major view of the output
    _, cot, _, _, ht, w = x_ref.shape
    uint_sub = jnp.uint16 if sub_bits == 16 else jnp.uint8
    words = []
    for i in range(r):
        word = None
        for j in range(r):
            plane = x_ref[0, :, i, j, :, :]                          # (Cot, Ht, W)
            bits = lax.bitcast_convert_type(plane, uint_sub).astype(jnp.uint32)
            k = j if low_first else (r - 1 - j)
            piece = bits if k == 0 else (bits << (sub_bits * k))
            word = piece if word is None else (word | piece)
        words.append(word)                                           # (Cot, Ht, W) u32
    # Height interleave: output row h*r + i <- input row h of phase i.
    y = jnp.stack(words, axis=2)                                     # (Cot, Ht, r, W)
    o_ref[0] = y.reshape(cot, ht * r, w)


def _ps_general_kernel(x_ref, o_ref, *, r):
    # Fallback for dtypes/factors that cannot be bit-packed into u32 lanes
    # (e.g. float32 with r=2, or lane-sparse widths).
    # x_ref: (1, Cot, r, r, Ht, W);  o_ref: (1, Cot, Ht*r, W*r)
    _, cot, _, _, ht, w = x_ref.shape
    rows = []
    for i in range(r):
        # Width (lane) interleave over j done as a leading-dim merge in
        # transposed space:  t[c, w*r + j, h] = x[c, i, j, h, w]
        planes_t = [jnp.swapaxes(x_ref[0, :, i, j, :, :], -1, -2) for j in range(r)]
        t = jnp.stack(planes_t, axis=2)                              # (Cot, W, r, Ht)
        t = t.reshape(cot, w * r, ht)                                # (Cot, W*r, Ht)
        rows.append(jnp.swapaxes(t, -1, -2))                         # (Cot, Ht, W*r)
    y = jnp.stack(rows, axis=2)                                      # (Cot, Ht, r, W*r)
    o_ref[0] = y.reshape(cot, ht * r, w * r)
    # TODO(synk): this path costs 2 XLU(transpose) passes per element; a
    # roll/select-based lane interleave could cut it if it ever dominates.


# ---------------------------------------------------------------------------
# public wrapper (forward pass of MyPixelShuffle)
# ---------------------------------------------------------------------------
def pixel_shuffle(x, upscale_factor):
    """Pallas TPU pixel shuffle: (B, C, H, W) -> (B, C/r^2, H*r, W*r), NCHW."""
    r = int(upscale_factor)
    B, C, H, W = x.shape
    if r == 1:
        return x
    assert C % (r * r) == 0, "channels must be divisible by upscale_factor**2"
    Co = C // (r * r)
    dtype = x.dtype
    itemsize = jnp.dtype(dtype).itemsize

    x6 = x.reshape(B, Co, r, r, H, W)            # free row-major view
    Cot, Ht = _choose_tiles(Co, H, W, r, itemsize)
    Cot, Ht = _split_for_megacore(B, Co, H, Cot, Ht, itemsize)
    grid = (B, _cdiv(Co, Cot), _cdiv(H, Ht))

    in_spec = pl.BlockSpec((1, Cot, r, r, Ht, W),
                           lambda b, cb, hb: (b, cb, 0, 0, hb, 0))
    cparams = pltpu.CompilerParams(
        dimension_semantics=("parallel", "parallel", "parallel"))
    cost = pl.CostEstimate(flops=0, transcendentals=0,
                           bytes_accessed=2 * x.size * itemsize)

    packable = (r * itemsize == 4 and itemsize in (1, 2)
                and dtype != jnp.bool_ and W >= 128)
    if packable:
        # Fast path: the width interleave is element-wise bit packing into u32,
        # so there is no cross-lane data movement at all.
        sub_bits = 8 * itemsize
        kernel = functools.partial(_ps_packed_kernel, r=r, sub_bits=sub_bits,
                                   low_first=_bitcast_low_first(sub_bits))
        y = pl.pallas_call(
            kernel,
            out_shape=jax.ShapeDtypeStruct((B, Co, H * r, W), jnp.uint32),
            grid=grid,
            in_specs=[in_spec],
            out_specs=pl.BlockSpec((1, Cot, Ht * r, W),
                                   lambda b, cb, hb: (b, cb, hb, 0)),
            compiler_params=cparams,
            cost_estimate=cost,
        )(x6)
        y = lax.bitcast_convert_type(y, dtype)                 # (B,Co,H*r,W,r) view
        return y.reshape(B, Co, H * r, W * r)
    else:
        kernel = functools.partial(_ps_general_kernel, r=r)
        return pl.pallas_call(
            kernel,
            out_shape=jax.ShapeDtypeStruct((B, Co, H * r, W * r), dtype),
            grid=grid,
            in_specs=[in_spec],
            out_specs=pl.BlockSpec((1, Cot, Ht * r, W * r),
                                   lambda b, cb, hb: (b, cb, hb, 0)),
            compiler_params=cparams,
            cost_estimate=cost,
        )(x6)


class MyPixelShuffle:
    """Thin module-like wrapper matching the PyTorch spec."""

    def __init__(self, upscale_factor):
        self.upscale_factor = upscale_factor

    def __call__(self, x):
        return pixel_shuffle(x, self.upscale_factor)


# ---------------------------------------------------------------------------
# pure-JAX reference (mirrors the torch view/permute/reshape exactly)
# ---------------------------------------------------------------------------
def pixel_shuffle_ref(x, r):
    B, C, H, W = x.shape
    Co = C // (r * r)
    v = x.reshape(B, Co, r, r, H, W)
    return jnp.transpose(v, (0, 1, 4, 2, 5, 3)).reshape(B, Co, H * r, W * r)


if __name__ == "__main__":
    key = jax.random.PRNGKey(0)
    r = 2

    # Packed (lane-dense u32) path: bf16, r=2, W=128.
    B, C, H, W = 2, 16, 16, 128
    x = jax.random.normal(key, (B, C, H, W), jnp.float32).astype(jnp.bfloat16)
    mod = MyPixelShuffle(r)
    y = jax.jit(mod)(x)
    jax.block_until_ready(y)
    assert y.shape == (B, C // (r * r), H * r, W * r), y.shape
    assert y.dtype == x.dtype
    assert bool(jnp.array_equal(y, pixel_shuffle_ref(x, r))), "packed path mismatch"

    # General path: f32, r=2 (r * itemsize != 4, cross-lane interleave in-kernel).
    x32 = jax.random.normal(jax.random.PRNGKey(0), (1, 8, 16, 128), jnp.float32)
    y32 = jax.jit(pixel_shuffle, static_argnames=("upscale_factor",))(
        x32, upscale_factor=r)
    jax.block_until_ready(y32)
    assert y32.shape == (1, 2, 32, 256), y32.shape
    assert bool(jnp.array_equal(y32, pixel_shuffle_ref(x32, r))), "general path mismatch"

    print("KERNEL_OK")
</pallas_src>

<mosaic_0001>
module attributes {stable_mosaic.version = 11 : i64} {
  func.func @_ps_packed_kernel(%arg0: i32, %arg1: i32, %arg2: i32, %arg3: memref<1x4x2x2x16x128xbf16, #tpu.memory_space<vmem>>, %arg4: memref<1x4x32x128xi32, #tpu.memory_space<vmem>>) attributes {dimension_semantics = [#tpu.dimension_semantics<parallel>, #tpu.dimension_semantics<parallel>, #tpu.dimension_semantics<parallel>], iteration_bounds = array<i64: 2, 1, 1>, scalar_prefetch = 0 : i64, scratch_operands = 0 : i64, tpu.core_type = #tpu.core_type<tc>, window_params = [{transform_indices = @transform_0, window_bounds = array<i64: 1, 4, 2, 2, 16, 128>}, {transform_indices = @transform_1, window_bounds = array<i64: 1, 4, 32, 128>}]} {
    %c0 = arith.constant 0 : index
    %c0_0 = arith.constant 0 : index
    %c0_1 = arith.constant 0 : index
    %c0_2 = arith.constant 0 : index
    %c0_3 = arith.constant 0 : index
    %c0_4 = arith.constant 0 : index
    %0 = vector.load %arg3[%c0, %c0_0, %c0_1, %c0_2, %c0_3, %c0_4] : memref<1x4x2x2x16x128xbf16, #tpu.memory_space<vmem>>, vector<1x4x1x1x16x128xbf16>
    %1 = vector.shape_cast %0 : vector<1x4x1x1x16x128xbf16> to vector<4x16x128xbf16>
    %2 = tpu.bitcast %1 : vector<4x16x128xbf16> -> vector<4x16x128xi16>
    %3 = arith.extui %2 : vector<4x16x128xi16> to vector<4x16x128xi32>
    %c0_5 = arith.constant 0 : index
    %c0_6 = arith.constant 0 : index
    %c0_7 = arith.constant 0 : index
    %c1 = arith.constant 1 : index
    %c0_8 = arith.constant 0 : index
    %c0_9 = arith.constant 0 : index
    %4 = vector.load %arg3[%c0_5, %c0_6, %c0_7, %c1, %c0_8, %c0_9] : memref<1x4x2x2x16x128xbf16, #tpu.memory_space<vmem>>, vector<1x4x1x1x16x128xbf16>
    %5 = vector.shape_cast %4 : vector<1x4x1x1x16x128xbf16> to vector<4x16x128xbf16>
    %6 = tpu.bitcast %5 : vector<4x16x128xbf16> -> vector<4x16x128xi16>
    %7 = arith.extui %6 : vector<4x16x128xi16> to vector<4x16x128xi32>
    %c16_i32 = arith.constant 16 : i32
    %8 = vector.broadcast %c16_i32 : i32 to vector<4x16x128xi32>
    %9 = arith.shli %7, %8 : vector<4x16x128xi32>
    %10 = arith.ori %3, %9 : vector<4x16x128xi32>
    %c0_10 = arith.constant 0 : index
    %c0_11 = arith.constant 0 : index
    %c1_12 = arith.constant 1 : index
    %c0_13 = arith.constant 0 : index
    %c0_14 = arith.constant 0 : index
    %c0_15 = arith.constant 0 : index
    %11 = vector.load %arg3[%c0_10, %c0_11, %c1_12, %c0_13, %c0_14, %c0_15] : memref<1x4x2x2x16x128xbf16, #tpu.memory_space<vmem>>, vector<1x4x1x1x16x128xbf16>
    %12 = vector.shape_cast %11 : vector<1x4x1x1x16x128xbf16> to vector<4x16x128xbf16>
    %13 = tpu.bitcast %12 : vector<4x16x128xbf16> -> vector<4x16x128xi16>
    %14 = arith.extui %13 : vector<4x16x128xi16> to vector<4x16x128xi32>
    %c0_16 = arith.constant 0 : index
    %c0_17 = arith.constant 0 : index
    %c1_18 = arith.constant 1 : index
    %c1_19 = arith.constant 1 : index
    %c0_20 = arith.constant 0 : index
    %c0_21 = arith.constant 0 : index
    %15 = vector.load %arg3[%c0_16, %c0_17, %c1_18, %c1_19, %c0_20, %c0_21] : memref<1x4x2x2x16x128xbf16, #tpu.memory_space<vmem>>, vector<1x4x1x1x16x128xbf16>
    %16 = vector.shape_cast %15 : vector<1x4x1x1x16x128xbf16> to vector<4x16x128xbf16>
    %17 = tpu.bitcast %16 : vector<4x16x128xbf16> -> vector<4x16x128xi16>
    %18 = arith.extui %17 : vector<4x16x128xi16> to vector<4x16x128xi32>
    %c16_i32_22 = arith.constant 16 : i32
    %19 = vector.broadcast %c16_i32_22 : i32 to vector<4x16x128xi32>
    %20 = arith.shli %18, %19 : vector<4x16x128xi32>
    %21 = arith.ori %14, %20 : vector<4x16x128xi32>
    %22 = vector.shape_cast %10 : vector<4x16x128xi32> to vector<4x16x1x128xi32>
    %23 = vector.shape_cast %21 : vector<4x16x128xi32> to vector<4x16x1x128xi32>
    %24 = tpu.concatenate %22, %23 in 2 : vector<4x16x1x128xi32>, vector<4x16x1x128xi32> -> vector<4x16x2x128xi32>
    %25 = vector.shape_cast %24 : vector<4x16x2x128xi32> to vector<4x32x128xi32>
    %c0_23 = arith.constant 0 : index
    %c0_24 = arith.constant 0 : index
    %c0_25 = arith.constant 0 : index
    %c0_26 = arith.constant 0 : index
    %26 = vector.load %arg4[%c0_23, %c0_24, %c0_25, %c0_26] : memref<1x4x32x128xi32, #tpu.memory_space<vmem>>, vector<1x4x32x128xi32>
    %27 = vector.shape_cast %26 : vector<1x4x32x128xi32> to vector<4x32x128xi32>
    %28 = vector.shape_cast %25 : vector<4x32x128xi32> to vector<1x4x32x128xi32>
    tpu.vector_store %arg4[%c0_23, %c0_24, %c0_25, %c0_26], %28 {strides = array<i32>} : memref<1x4x32x128xi32, #tpu.memory_space<vmem>>, vector<1x4x32x128xi32>,
    return
  }
  func.func @transform_0(%arg0: i32, %arg1: i32, %arg2: i32) -> (i32, i32, i32, i32, i32, i32) {
    %c0_i32 = arith.constant 0 : i32
    %c0_i32_0 = arith.constant 0 : i32
    %c0_i32_1 = arith.constant 0 : i32
    %c0_i32_2 = arith.constant 0 : i32
    return %arg0, %arg1, %c0_i32, %c0_i32_0, %arg2, %c0_i32_1 : i32, i32, i32, i32, i32, i32
  }
  func.func @transform_1(%arg0: i32, %arg1: i32, %arg2: i32) -> (i32, i32, i32, i32) {
    %c0_i32 = arith.constant 0 : i32
    %c0_i32_0 = arith.constant 0 : i32
    return %arg0, %arg1, %arg2, %c0_i32 : i32, i32, i32, i32
  }
}

</mosaic_0001>

<llo_original>
// kernel: _unnamed_function_.1
$region0: #{_unnamed_function_.1}
  #allocation0 [shape = 'u32[]', space=smem, size = 0x4, offset = 0x4, fixed_abs, tag = 'smem constant byte address 0x4 - core index']
  #allocation1 [shape = 'u32[72,128]{1,0:T(1,128)}', space=vmem, size = 0x9000, scoped, tag = 'internal scratch']
  %s0 = inlined_call_operand.hbm [shape: bf16[2,4,2,2,16,128], index: 0, kind: input, shape index: {}]
  %s1 = inlined_call_operand.vmem [shape: u32[2,4,32,128], index: 1, kind: output, shape index: {}]
  %s2 = sld [smem:[#allocation0]]
  $region41: #{_unnamed_function_.1} parent=0
    _
  %s4 = ssub.s32 1, %s2
  %s5 = scalar_select 0, %s4, %s2
  $region1: #{_unnamed_function_.1} parent=0
    #allocation2 [shape = 'u8[131072]{0}', space=vmem, size = 0x20000, scoped, tag = 'input window, operand 0']
    #allocation3 [shape = 's32[2]{0}', space=sflag, size = 0x8, scoped, tag = 'scoped memory for _unnamed_function_.1']
    %6 = vsyncpa [#allocation3], 0
    %s7 = scalar_lea.sflag [#allocation3], 1
    %8 = vsyncpa %s7, 0
    loop: start=0, step=1, limit=4
    $region2: #{_unnamed_function_.1} parent=1 // loop_pre_header
      _
    $region3: #{_unnamed_function_.1} parent=1 // loop_header
      %s10 = sphi 0, %s14
      %p11 = scmp.ge.s32.totalorder %s10, 4
      %s17 = sphi 0, %s36
      %s18 = sphi 0, %s32
      %s19 = sphi 0, %s28
      %s20 = sphi 0, %s17
      %s21 = sphi 0, %s18
      %s22 = sphi 0, %s19
      %s23 = sphi 0, %s20
      %s24 = sphi 0, %s21
      %s25 = sphi 0, %s22
      %s43 = sphi 0, %s45
      %s46 = sphi 0, %s43
      %s47 = sphi 0, %s46
      %s63 = sphi 0, %s47
      %s73 = sphi 0, %s75
      %s76 = sphi 0, %s73
      %s77 = sphi 0, %s76
      %s93 = sphi 0, %s77
    $region4: #{_unnamed_function_.1} parent=1 // loop_header_branch
      %13 = sbr.rel (%p11) target = $region8
    $region5: #{_unnamed_function_.1} parent=1 // loop_body
      %s15 = ssub.s32 %s10, 1
      %s16 = ssub.s32 %s10, 2
      %s26 = sadd.s32 1, %s19
      %p27 = scmp.ge.s32.totalorder %s26, 1
      %s28 = scalar_select %p27, 0, %s26
      %s29 = sadd.s32 1, %s18
      %s30 = scalar_select %p27, %s29, %s18
      %p31 = scmp.ge.s32.totalorder %s30, 1
      %s32 = scalar_select %p31, 0, %s30
      %s33 = sadd.s32 1, %s17
      %s34 = scalar_select %p31, %s33, %s17
      %p35 = scmp.ge.s32.totalorder %s34, 2
      %s36 = scalar_select %p35, 0, %s34
      %s37 = ssub.s32 %s17, %s36
      %s38 = ssub.s32 %s18, %s32
      %s39 = sor.u32 %s37, %s38
      %s40 = ssub.s32 %s19, %s28
      %s41 = sor.u32 %s39, %s40
      %p42 = scmp.eq.s32.totalorder %s41, 0
      %s44 = sadd.s32 %s43, 1
      %s45 = scalar_select %p42, %s43, %s44
      %p48 = pneg %p42
      %p49 = scmp.eq.s32.totalorder %s10, 1
      %p50 = por %p48, %p49
      %p51 = scmp.ne.s32.totalorder %s43, %s46
      %p52 = scmp.eq.s32.totalorder %s10, 0
      %p53 = por %p51, %p52
      %p54 = scmp.ne.s32.totalorder %s43, %s46
      %p55 = scmp.eq.s32.totalorder %s15, 1
      %p56 = por %p54, %p55
      %p57 = scmp.ne.s32.totalorder %s46, %s47
      %p58 = scmp.eq.s32.totalorder %s15, 0
      %p59 = por %p57, %p58
      %p60 = scmp.ne.s32.totalorder %s46, %s47
      %p61 = scmp.eq.s32.totalorder %s16, 1
      %p62 = por %p60, %p61
      %p64 = scmp.ne.s32.totalorder %s47, %s63
      %p65 = scmp.eq.s32.totalorder %s16, 0
      %p66 = por %p64, %p65
      %s67 = ssub.s32 %s17, %s36
      %s68 = ssub.s32 %s18, %s32
      %s69 = sor.u32 %s67, %s68
      %s70 = ssub.s32 %s19, %s28
      %s71 = sor.u32 %s69, %s70
      %p72 = scmp.eq.s32.totalorder %s71, 0
      %s74 = sadd.s32 %s73, 1
      %s75 = scalar_select %p72, %s73, %s74
      %p78 = pneg %p72
      %p79 = scmp.eq.s32.totalorder %s10, 1
      %p80 = por %p78, %p79
      %p81 = scmp.ne.s32.totalorder %s73, %s76
      %p82 = scmp.eq.s32.totalorder %s10, 0
      %p83 = por %p81, %p82
      %p84 = scmp.ne.s32.totalorder %s73, %s76
      %p85 = scmp.eq.s32.totalorder %s15, 1
      %p86 = por %p84, %p85
      %p87 = scmp.ne.s32.totalorder %s76, %s77
      %p88 = scmp.eq.s32.totalorder %s15, 0
      %p89 = por %p87, %p88
      %p90 = scmp.ne.s32.totalorder %s76, %s77
      %p91 = scmp.eq.s32.totalorder %s16, 1
      %p92 = por %p90, %p91
      %p94 = scmp.ne.s32.totalorder %s77, %s93
      %p95 = scmp.eq.s32.totalorder %s16, 0
      %p96 = por %p94, %p95
      %p97 = scmp.le.s32.totalorder 1, %s10
      %p98 = scmp.lt.s32.totalorder %s10, 3
      %p99 = pnand %p97, %p98
      %p100 = pneg %p99
      // Predicated region
      $region9: #{_unnamed_function_.1} parent=5 // pred_check
        _
      $region10: #{_unnamed_function_.1} parent=5 // pred_check_branch
        %102 = sbr.rel (%p99) target = $region12
      $region11: #{_unnamed_function_.1} parent=5 // pred_region
        %s103 = ssub.s32 %s10, 1
      $region12: #{_unnamed_function_.1} parent=5 // pred_fallthru
        _
      %p104 = scmp.lt.s32.totalorder %s10, 2
      // Predicated region
      $region13: #{_unnamed_function_.1} parent=5 // pred_check
        %p105 = pneg %p104
      $region14: #{_unnamed_function_.1} parent=5 // pred_check_branch
        %107 = sbr.rel (%p105) target = $region16
      $region15: #{_unnamed_function_.1} parent=5 // pred_region
        // Predicated region
        $region17: #{_unnamed_function_.1} parent=15 // pred_check
          %p108 = pneg %p53
        $region18: #{_unnamed_function_.1} parent=15 // pred_check_branch
          %110 = sbr.rel (%p108) target = $region20
        $region19: #{_unnamed_function_.1} parent=15 // pred_region
          %s111 = sand.u32 %s43, 1
          %s112 = scalar_lea.sflag [#allocation3], %s111
          %s113 = sand.u32 %s43, 1
          %s114 = smul.addr %s113, 128
          %s115 = scalar_lea.vmem [#allocation2], %s114
          %s116 = smul.u32 4, %s18
          %s117 = smul.u32 2, %s19
          %119 = vsyncadd %s112, 0
          %s120 = smul.addr %s116, 8
          %s121 = sadd.s32 %s117, %s120
          %s122 = smul.addr %s17, 32
          %s123 = sadd.s32 %s121, %s122
          %s124 = smul.addr %s123, 4
          %s125 = scalar_lea.hbm %s0, %s124
          %s126 = sshll.u32 %s125, 4
          %s127 = int_to_ptr.hbm [resolvable:$true] %s126
          %s128 = sshll.u32 %s115, 4
          %s129 = int_to_ptr.vmem [resolvable:$true] %s128
          %134 = dma.hbm_to_vmem [thread:$0]  %s127, 2048, %s129, %s112, 64, 64, 4
        $region20: #{_unnamed_function_.1} parent=15 // pred_fallthru
          _
      $region16: #{_unnamed_function_.1} parent=5 // pred_fallthru
        _
      %p135 = scmp.le.s32.totalorder 1, %s10
      %p136 = scmp.lt.s32.totalorder %s10, 3
      %p137 = pnand %p135, %p136
      %p138 = pneg %p137
      // Predicated region
      $region21: #{_unnamed_function_.1} parent=5 // pred_check
        _
      $region22: #{_unnamed_function_.1} parent=5 // pred_check_branch
        %140 = sbr.rel (%p137) target = $region24
      $region23: #{_unnamed_function_.1} parent=5 // pred_region
        %s141 = ssub.s32 %s10, 1
        %s142 = sand.u32 %s46, 1
        %s143 = scalar_lea.sflag [#allocation3], %s142
        %s144 = sand.u32 %s46, 1
        %s145 = smul.addr %s144, 128
        %s146 = scalar_lea.vmem [#allocation2], %s145
        // Predicated region
        $region25: #{_unnamed_function_.1} parent=23 // pred_check
          %p147 = pneg %p59
        $region26: #{_unnamed_function_.1} parent=23 // pred_check_branch
          %149 = sbr.rel (%p147) target = $region28
        $region27: #{_unnamed_function_.1} parent=23 // pred_region
          %151 = dma.done %s143, 2048
        $region28: #{_unnamed_function_.1} parent=23 // pred_fallthru
          _
        %s152 = sand.u32 %s46, 1
        %s153 = scalar_lea.sflag [#allocation3], %s152
        %s154 = sand.u32 %s46, 1
        %s155 = smul.addr %s154, 128
        %s156 = scalar_lea.vmem [#allocation2], %s155
        %p157 = pneg %p59
        %p158 = pneg %p56
        %p159 = pneg %p89
        %p160 = pneg %p86
        %s161 = smul.u32 4, %s21
        %s162 = smul.u32 4, %s22
        %p163 = scmp.lt.s32.totalorder %s20, 1
        %s164 = scalar_select %p163, %s20, 1
        %p165 = scmp.lt.s32.totalorder %s161, 3
        %s166 = scalar_select %p165, %s161, 3
        %p167 = scmp.lt.s32.totalorder %s162, 3
        %s168 = scalar_select %p167, %s162, 3
        %s169 = smul.addr %s166, 4
        %s170 = sadd.s32 %s168, %s169
        %s171 = smul.addr %s164, 16
        %s172 = sadd.s32 %s170, %s171
        %s173 = smul.addr %s172, 8
        %s174 = scalar_lea.vmem %s1, %s173
        %s175 = smul.u32 4, %s21
        %s176 = smul.u32 2, %s22
        %s177 = smul.u32 4, %s21
        %s178 = smul.u32 4, %s22
        %p179 = scmp.lt.s32.totalorder %s20, 1
        %s180 = scalar_select %p179, %s20, 1
        %p181 = scmp.lt.s32.totalorder %s177, 3
        %s182 = scalar_select %p181, %s177, 3
        %p183 = scmp.lt.s32.totalorder %s178, 3
        %s184 = scalar_select %p183, %s178, 3
        %s185 = smul.addr %s182, 4
        %s186 = sadd.s32 %s184, %s185
        %s187 = smul.addr %s180, 16
        %s188 = sadd.s32 %s186, %s187
        %s189 = smul.addr %s188, 8
        %s190 = scalar_lea.vmem %s1, %s189
        %s191 = smul.u32 4, %s21
        %s192 = smul.u32 4, %s22
        %v193 = vld [vmem:[%s146] sm:$0xf]
        %v194 = vld [vmem:[%s146 + $0x4] sm:$0xf]
        %v195 = vld [vmem:[%s146 + $0x20] sm:$0xf]
        %v196 = vld [vmem:[%s146 + $0x24] sm:$0xf]
        %v197 = vld [vmem:[%s146 + $0x40] sm:$0xf]
        %v198 = vld [vmem:[%s146 + $0x44] sm:$0xf]
        %v199 = vld [vmem:[%s146 + $0x60] sm:$0xf]
        %v200 = vld [vmem:[%s146 + $0x64] sm:$0xf]
        %v209 = vunpack.c.l.b16 %v193
        %v210 = vunpack.c.l.b16 %v194
        %v211 = vunpack.c.l.b16 %v195
        %v212 = vunpack.c.l.b16 %v196
        %v213 = vunpack.c.l.b16 %v197
        %v214 = vunpack.c.l.b16 %v198
        %v215 = vunpack.c.l.b16 %v199
        %v216 = vunpack.c.l.b16 %v200
        %v217 = vpack.c.b16 %v210, %v209
        %v218 = vpack.c.b16 %v212, %v211
        %v219 = vpack.c.b16 %v214, %v213
        %v220 = vpack.c.b16 %v216, %v215
        %v221 = vunpack.c.l.b16 %v217
        %v222 = vunpack.c.h.b16 %v217
        %v223 = vunpack.c.l.b16 %v218
        %v224 = vunpack.c.h.b16 %v218
        %v225 = vunpack.c.l.b16 %v219
        %v226 = vunpack.c.h.b16 %v219
        %v227 = vunpack.c.l.b16 %v220
        %v228 = vunpack.c.h.b16 %v220
        %v229 = vand.u32 %v221, 65535
        %v230 = vand.u32 %v222, 65535
        %v231 = vand.u32 %v223, 65535
        %v232 = vand.u32 %v224, 65535
        %v233 = vand.u32 %v225, 65535
        %v234 = vand.u32 %v226, 65535
        %v235 = vand.u32 %v227, 65535
        %v236 = vand.u32 %v228, 65535
        %s237 = scalar_lea.vmem %s146, 8 [#allocation2]
        %v238 = vld [vmem:[%s237] sm:$0xf]
        %v239 = vld [vmem:[%s237 + $0x4] sm:$0xf]
        %v240 = vld [vmem:[%s237 + $0x20] sm:$0xf]
        %v241 = vld [vmem:[%s237 + $0x24] sm:$0xf]
        %v242 = vld [vmem:[%s237 + $0x40] sm:$0xf]
        %v243 = vld [vmem:[%s237 + $0x44] sm:$0xf]
        %v244 = vld [vmem:[%s237 + $0x60] sm:$0xf]
        %v245 = vld [vmem:[%s237 + $0x64] sm:$0xf]
        %v254 = vunpack.c.l.b16 %v238
        %v255 = vunpack.c.l.b16 %v239
        %v256 = vunpack.c.l.b16 %v240
        %v257 = vunpack.c.l.b16 %v241
        %v258 = vunpack.c.l.b16 %v242
        %v259 = vunpack.c.l.b16 %v243
        %v260 = vunpack.c.l.b16 %v244
        %v261 = vunpack.c.l.b16 %v245
        %v262 = vpack.c.b16 %v255, %v254
        %v263 = vpack.c.b16 %v257, %v256
        %v264 = vpack.c.b16 %v259, %v258
        %v265 = vpack.c.b16 %v261, %v260
        %v266 = vunpack.c.l.b16 %v262
        %v267 = vunpack.c.h.b16 %v262
        %v268 = vunpack.c.l.b16 %v263
        %v269 = vunpack.c.h.b16 %v263
        %v270 = vunpack.c.l.b16 %v264
        %v271 = vunpack.c.h.b16 %v264
        %v272 = vunpack.c.l.b16 %v265
        %v273 = vunpack.c.h.b16 %v265
        %v274 = vand.u32 %v266, 65535
        %v275 = vand.u32 %v267, 65535
        %v276 = vand.u32 %v268, 65535
        %v277 = vand.u32 %v269, 65535
        %v278 = vand.u32 %v270, 65535
        %v279 = vand.u32 %v271, 65535
        %v280 = vand.u32 %v272, 65535
        %v281 = vand.u32 %v273, 65535
        %v282 = vshll.u32 %v274, 16
        %v283 = vshll.u32 %v275, 16
        %v284 = vshll.u32 %v276, 16
        %v285 = vshll.u32 %v277, 16
        %v286 = vshll.u32 %v278, 16
        %v287 = vshll.u32 %v279, 16
        %v288 = vshll.u32 %v280, 16
        %v289 = vshll.u32 %v281, 16
        %v290 = vor.u32 %v229, %v282
        %v291 = vor.u32 %v230, %v283
        %v292 = vor.u32 %v231, %v284
        %v293 = vor.u32 %v232, %v285
        %v294 = vor.u32 %v233, %v286
        %v295 = vor.u32 %v234, %v287
        %v296 = vor.u32 %v235, %v288
        %v297 = vor.u32 %v236, %v289
        %s298 = scalar_lea.vmem %s146, 16 [#allocation2]
        %v299 = vld [vmem:[%s298] sm:$0xf]
        %v300 = vld [vmem:[%s298 + $0x4] sm:$0xf]
        %v301 = vld [vmem:[%s298 + $0x20] sm:$0xf]
        %v302 = vld [vmem:[%s298 + $0x24] sm:$0xf]
        %v303 = vld [vmem:[%s298 + $0x40] sm:$0xf]
        %v304 = vld [vmem:[%s298 + $0x44] sm:$0xf]
        %v305 = vld [vmem:[%s298 + $0x60] sm:$0xf]
        %v306 = vld [vmem:[%s298 + $0x64] sm:$0xf]
        %v315 = vunpack.c.l.b16 %v299
        %v316 = vunpack.c.l.b16 %v300
        %v317 = vunpack.c.l.b16 %v301
        %v318 = vunpack.c.l.b16 %v302
        %v319 = vunpack.c.l.b16 %v303
        %v320 = vunpack.c.l.b16 %v304
        %v321 = vunpack.c.l.b16 %v305
        %v322 = vunpack.c.l.b16 %v306
        %v323 = vpack.c.b16 %v316, %v315
        %v324 = vpack.c.b16 %v318, %v317
        %v325 = vpack.c.b16 %v320, %v319
        %v326 = vpack.c.b16 %v322, %v321
        %v327 = vunpack.c.l.b16 %v323
        %v328 = vunpack.c.h.b16 %v323
        %v329 = vunpack.c.l.b16 %v324
        %v330 = vunpack.c.h.b16 %v324
        %v331 = vunpack.c.l.b16 %v325
        %v332 = vunpack.c.h.b16 %v325
        %v333 = vunpack.c.l.b16 %v326
        %v334 = vunpack.c.h.b16 %v326
        %v335 = vand.u32 %v327, 65535
        %v336 = vand.u32 %v328, 65535
        %v337 = vand.u32 %v329, 65535
        %v338 = vand.u32 %v330, 65535
        %v339 = vand.u32 %v331, 65535
        %v340 = vand.u32 %v332, 65535
        %v341 = vand.u32 %v333, 65535
        %v342 = vand.u32 %v334, 65535
        %s343 = scalar_lea.vmem %s146, 24 [#allocation2]
        %v344 = vld [vmem:[%s343] sm:$0xf]
        %v345 = vld [vmem:[%s343 + $0x4] sm:$0xf]
        %v346 = vld [vmem:[%s343 + $0x20] sm:$0xf]
        %v347 = vld [vmem:[%s343 + $0x24] sm:$0xf]
        %v348 = vld [vmem:[%s343 + $0x40] sm:$0xf]
        %v349 = vld [vmem:[%s343 + $0x44] sm:$0xf]
        %v350 = vld [vmem:[%s343 + $0x60] sm:$0xf]
        %v351 = vld [vmem:[%s343 + $0x64] sm:$0xf]
        %v360 = vunpack.c.l.b16 %v344
        %v361 = vunpack.c.l.b16 %v345
        %v362 = vunpack.c.l.b16 %v346
        %v363 = vunpack.c.l.b16 %v347
        %v364 = vunpack.c.l.b16 %v348
        %v365 = vunpack.c.l.b16 %v349
        %v366 = vunpack.c.l.b16 %v350
        %v367 = vunpack.c.l.b16 %v351
        %v368 = vpack.c.b16 %v361, %v360
        %v369 = vpack.c.b16 %v363, %v362
        %v370 = vpack.c.b16 %v365, %v364
        %v371 = vpack.c.b16 %v367, %v366
        %v372 = vunpack.c.l.b16 %v368
        %v373 = vunpack.c.h.b16 %v368
        %v374 = vunpack.c.l.b16 %v369
        %v375 = vunpack.c.h.b16 %v369
        %v376 = vunpack.c.l.b16 %v370
        %v377 = vunpack.c.h.b16 %v370
        %v378 = vunpack.c.l.b16 %v371
        %v379 = vunpack.c.h.b16 %v371
        %v380 = vand.u32 %v372, 65535
        %v381 = vand.u32 %v373, 65535
        %v382 = vand.u32 %v374, 65535
        %v383 = vand.u32 %v375, 65535
        %v384 = vand.u32 %v376, 65535
        %v385 = vand.u32 %v377, 65535
        %v386 = vand.u32 %v378, 65535
        %v387 = vand.u32 %v379, 65535
        %v388 = vshll.u32 %v380, 16
        %v389 = vshll.u32 %v381, 16
        %v390 = vshll.u32 %v382, 16
        %v391 = vshll.u32 %v383, 16
        %v392 = vshll.u32 %v384, 16
        %v393 = vshll.u32 %v385, 16
        %v394 = vshll.u32 %v386, 16
        %v395 = vshll.u32 %v387, 16
        %v396 = vor.u32 %v335, %v388
        %v397 = vor.u32 %v336, %v389
        %v398 = vor.u32 %v337, %v390
        %v399 = vor.u32 %v338, %v391
        %v400 = vor.u32 %v339, %v392
        %v401 = vor.u32 %v340, %v393
        %v402 = vor.u32 %v341, %v394
        %v403 = vor.u32 %v342, %v395
        %v404 = vrot.slane %v290, 1
        %v405 = vrot.slane %v290, 2
        %v406 = vrot.slane %v290, 3
        %v407 = vrot.slane %v290, 4
        %v408 = vrot.slane %v290, 5
        %v409 = vrot.slane %v290, 6
        %v410 = vrot.slane %v290, 7
        %v411 = vrot.slane %v291, 1
        %v412 = vrot.slane %v291, 2
        %v413 = vrot.slane %v291, 3
        %v414 = vrot.slane %v291, 4
        %v415 = vrot.slane %v291, 5
        %v416 = vrot.slane %v291, 6
        %v417 = vrot.slane %v291, 7
        %v418 = vrot.slane %v292, 1
        %v419 = vrot.slane %v292, 2
        %v420 = vrot.slane %v292, 3
        %v421 = vrot.slane %v292, 4
        %v422 = vrot.slane %v292, 5
        %v423 = vrot.slane %v292, 6
        %v424 = vrot.slane %v292, 7
        %v425 = vrot.slane %v293, 1
        %v426 = vrot.slane %v293, 2
        %v427 = vrot.slane %v293, 3
        %v428 = vrot.slane %v293, 4
        %v429 = vrot.slane %v293, 5
        %v430 = vrot.slane %v293, 6
        %v431 = vrot.slane %v293, 7
        %v432 = vrot.slane %v294, 1
        %v433 = vrot.slane %v294, 2
        %v434 = vrot.slane %v294, 3
        %v435 = vrot.slane %v294, 4
        %v436 = vrot.slane %v294, 5
        %v437 = vrot.slane %v294, 6
        %v438 = vrot.slane %v294, 7
        %v439 = vrot.slane %v295, 1
        %v440 = vrot.slane %v295, 2
        %v441 = vrot.slane %v295, 3
        %v442 = vrot.slane %v295, 4
        %v443 = vrot.slane %v295, 5
        %v444 = vrot.slane %v295, 6
        %v445 = vrot.slane %v295, 7
        %v446 = vrot.slane %v296, 1
        %v447 = vrot.slane %v296, 2
        %v448 = vrot.slane %v296, 3
        %v449 = vrot.slane %v296, 4
        %v450 = vrot.slane %v296, 5
        %v451 = vrot.slane %v296, 6
        %v452 = vrot.slane %v296, 7
        %v453 = vrot.slane %v297, 1
        %v454 = vrot.slane %v297, 2
        %v455 = vrot.slane %v297, 3
        %v456 = vrot.slane %v297, 4
        %v457 = vrot.slane %v297, 5
        %v458 = vrot.slane %v297, 6
        %v459 = vrot.slane %v297, 7
        %v460 = vrot.slane %v396, 1
        %v461 = vrot.slane %v396, 2
        %v462 = vrot.slane %v396, 3
        %v463 = vrot.slane %v396, 4
        %v464 = vrot.slane %v396, 5
        %v465 = vrot.slane %v396, 6
        %v466 = vrot.slane %v396, 7
        %v467 = vrot.slane %v397, 1
        %v468 = vrot.slane %v397, 2
        %v469 = vrot.slane %v397, 3
        %v470 = vrot.slane %v397, 4
        %v471 = vrot.slane %v397, 5
        %v472 = vrot.slane %v397, 6
        %v473 = vrot.slane %v397, 7
        %v474 = vrot.slane %v398, 1
        %v475 = vrot.slane %v398, 2
        %v476 = vrot.slane %v398, 3
        %v477 = vrot.slane %v398, 4
        %v478 = vrot.slane %v398, 5
        %v479 = vrot.slane %v398, 6
        %v480 = vrot.slane %v398, 7
        %v481 = vrot.slane %v399, 1
        %v482 = vrot.slane %v399, 2
        %v483 = vrot.slane %v399, 3
        %v484 = vrot.slane %v399, 4
        %v485 = vrot.slane %v399, 5
        %v486 = vrot.slane %v399, 6
        %v487 = vrot.slane %v399, 7
        %v488 = vrot.slane %v400, 1
        %v489 = vrot.slane %v400, 2
        %v490 = vrot.slane %v400, 3
        %v491 = vrot.slane %v400, 4
        %v492 = vrot.slane %v400, 5
        %v493 = vrot.slane %v400, 6
        %v494 = vrot.slane %v400, 7
        %v495 = vrot.slane %v401, 1
        %v496 = vrot.slane %v401, 2
        %v497 = vrot.slane %v401, 3
        %v498 = vrot.slane %v401, 4
        %v499 = vrot.slane %v401, 5
        %v500 = vrot.slane %v401, 6
        %v501 = vrot.slane %v401, 7
        %v502 = vrot.slane %v402, 1
        %v503 = vrot.slane %v402, 2
        %v504 = vrot.slane %v402, 3
        %v505 = vrot.slane %v402, 4
        %v506 = vrot.slane %v402, 5
        %v507 = vrot.slane %v402, 6
        %v508 = vrot.slane %v402, 7
        %v509 = vrot.slane %v403, 1
        %v510 = vrot.slane %v403, 2
        %v511 = vrot.slane %v403, 3
        %v512 = vrot.slane %v403, 4
        %v513 = vrot.slane %v403, 5
        %v514 = vrot.slane %v403, 6
        %v515 = vrot.slane %v403, 7
        %v516 = vperm.slane %v396, 0
        %v517 = vperm.slane %v460, 0
        %v518 = vperm.slane %v461, 0
        %v519 = vperm.slane %v462, 0
        %v520 = vperm.slane %v463, 0
        %v521 = vperm.slane %v464, 0
        %v522 = vperm.slane %v465, 0
        %v523 = vperm.slane %v466, 0
        %v524 = vperm.slane %v397, 0
        %v525 = vperm.slane %v467, 0
        %v526 = vperm.slane %v468, 0
        %v527 = vperm.slane %v469, 0
        %v528 = vperm.slane %v470, 0
        %v529 = vperm.slane %v471, 0
        %v530 = vperm.slane %v472, 0
        %v531 = vperm.slane %v473, 0
        %v532 = vperm.slane %v398, 0
        %v533 = vperm.slane %v474, 0
        %v534 = vperm.slane %v475, 0
        %v535 = vperm.slane %v476, 0
        %v536 = vperm.slane %v477, 0
        %v537 = vperm.slane %v478, 0
        %v538 = vperm.slane %v479, 0
        %v539 = vperm.slane %v480, 0
        %v540 = vperm.slane %v399, 0
        %v541 = vperm.slane %v481, 0
        %v542 = vperm.slane %v482, 0
        %v543 = vperm.slane %v483, 0
        %v544 = vperm.slane %v484, 0
        %v545 = vperm.slane %v485, 0
        %v546 = vperm.slane %v486, 0
        %v547 = vperm.slane %v487, 0
        %v548 = vperm.slane %v400, 0
        %v549 = vperm.slane %v488, 0
        %v550 = vperm.slane %v489, 0
        %v551 = vperm.slane %v490, 0
        %v552 = vperm.slane %v491, 0
        %v553 = vperm.slane %v492, 0
        %v554 = vperm.slane %v493, 0
        %v555 = vperm.slane %v494, 0
        %v556 = vperm.slane %v401, 0
        %v557 = vperm.slane %v495, 0
        %v558 = vperm.slane %v496, 0
        %v559 = vperm.slane %v497, 0
        %v560 = vperm.slane %v498, 0
        %v561 = vperm.slane %v499, 0
        %v562 = vperm.slane %v500, 0
        %v563 = vperm.slane %v501, 0
        %v564 = vperm.slane %v402, 0
        %v565 = vperm.slane %v502, 0
        %v566 = vperm.slane %v503, 0
        %v567 = vperm.slane %v504, 0
        %v568 = vperm.slane %v505, 0
        %v569 = vperm.slane %v506, 0
        %v570 = vperm.slane %v507, 0
        %v571 = vperm.slane %v508, 0
        %v572 = vperm.slane %v403, 0
        %v573 = vperm.slane %v509, 0
        %v574 = vperm.slane %v510, 0
        %v575 = vperm.slane %v511, 0
        %v576 = vperm.slane %v512, 0
        %v577 = vperm.slane %v513, 0
        %v578 = vperm.slane %v514, 0
        %v579 = vperm.slane %v515, 0
        %vm580 = vcmask 1040384
        %v581 = vsel %vm580, %v290, %v516
        %v582 = vsel %vm580, %v404, %v517
        %v583 = vsel %vm580, %v405, %v518
        %v584 = vsel %vm580, %v406, %v519
        %v585 = vsel %vm580, %v407, %v520
        %v586 = vsel %vm580, %v408, %v521
        %v587 = vsel %vm580, %v409, %v522
        %v588 = vsel %vm580, %v410, %v523
        %v589 = vsel %vm580, %v291, %v524
        %v590 = vsel %vm580, %v411, %v525
        %v591 = vsel %vm580, %v412, %v526
        %v592 = vsel %vm580, %v413, %v527
        %v593 = vsel %vm580, %v414, %v528
        %v594 = vsel %vm580, %v415, %v529
        %v595 = vsel %vm580, %v416, %v530
        %v596 = vsel %vm580, %v417, %v531
        %v597 = vsel %vm580, %v292, %v532
        %v598 = vsel %vm580, %v418, %v533
        %v599 = vsel %vm580, %v419, %v534
        %v600 = vsel %vm580, %v420, %v535
        %v601 = vsel %vm580, %v421, %v536
        %v602 = vsel %vm580, %v422, %v537
        %v603 = vsel %vm580, %v423, %v538
        %v604 = vsel %vm580, %v424, %v539
        %v605 = vsel %vm580, %v293, %v540
        %v606 = vsel %vm580, %v425, %v541
        %v607 = vsel %vm580, %v426, %v542
        %v608 = vsel %vm580, %v427, %v543
        %v609 = vsel %vm580, %v428, %v544
        %v610 = vsel %vm580, %v429, %v545
        %v611 = vsel %vm580, %v430, %v546
        %v612 = vsel %vm580, %v431, %v547
        %v613 = vsel %vm580, %v294, %v548
        %v614 = vsel %vm580, %v432, %v549
        %v615 = vsel %vm580, %v433, %v550
        %v616 = vsel %vm580, %v434, %v551
        %v617 = vsel %vm580, %v435, %v552
        %v618 = vsel %vm580, %v436, %v553
        %v619 = vsel %vm580, %v437, %v554
        %v620 = vsel %vm580, %v438, %v555
        %v621 = vsel %vm580, %v295, %v556
        %v622 = vsel %vm580, %v439, %v557
        %v623 = vsel %vm580, %v440, %v558
        %v624 = vsel %vm580, %v441, %v559
        %v625 = vsel %vm580, %v442, %v560
        %v626 = vsel %vm580, %v443, %v561
        %v627 = vsel %vm580, %v444, %v562
        %v628 = vsel %vm580, %v445, %v563
        %v629 = vsel %vm580, %v296, %v564
        %v630 = vsel %vm580, %v446, %v565
        %v631 = vsel %vm580, %v447, %v566
        %v632 = vsel %vm580, %v448, %v567
        %v633 = vsel %vm580, %v449, %v568
        %v634 = vsel %vm580, %v450, %v569
        %v635 = vsel %vm580, %v451, %v570
        %v636 = vsel %vm580, %v452, %v571
        %v637 = vsel %vm580, %v297, %v572
        %v638 = vsel %vm580, %v453, %v573
        %v639 = vsel %vm580, %v454, %v574
        %v640 = vsel %vm580, %v455, %v575
        %v641 = vsel %vm580, %v456, %v576
        %v642 = vsel %vm580, %v457, %v577
        %v643 = vsel %vm580, %v458, %v578
        %v644 = vsel %vm580, %v459, %v579
        %645 = vst [vmem:[#allocation1] ss:$4 sm:$0xff] %v581
        %s646 = scalar_lea.vmem [#allocation1], 1
        %647 = vst [vmem:[%s646] ss:$4 sm:$0xff] %v582
        %s648 = scalar_lea.vmem [#allocation1], 2
        %649 = vst [vmem:[%s648] ss:$4 sm:$0xff] %v583
        %s650 = scalar_lea.vmem [#allocation1], 3
        %651 = vst [vmem:[%s650] ss:$4 sm:$0xff] %v584
        %s652 = scalar_lea.vmem [#allocation1], 32
        %653 = vst [vmem:[%s652] ss:$4 sm:$0xff] %v585
        %s654 = scalar_lea.vmem [#allocation1], 33
        %655 = vst [vmem:[%s654] ss:$4 sm:$0xff] %v586
        %s656 = scalar_lea.vmem [#allocation1], 34
        %657 = vst [vmem:[%s656] ss:$4 sm:$0xff] %v587
        %s658 = scalar_lea.vmem [#allocation1], 35
        %659 = vst [vmem:[%s658] ss:$4 sm:$0xff] %v588
        %v660 = vld.sshfl [vmem:[#allocation1] sm:$0xff pattern:$0x73625140]
        %v661 = vld.sshfl [vmem:[#allocation1 + $0x20] sm:$0xff pattern:$0x73625140]
        %662 = vst [vmem:[#allocation1] ss:$4 sm:$0xff] %v589
        %663 = vst [vmem:[%s646] ss:$4 sm:$0xff] %v590
        %664 = vst [vmem:[%s648] ss:$4 sm:$0xff] %v591
        %665 = vst [vmem:[%s650] ss:$4 sm:$0xff] %v592
        %666 = vst [vmem:[%s652] ss:$4 sm:$0xff] %v593
        %667 = vst [vmem:[%s654] ss:$4 sm:$0xff] %v594
        %668 = vst [vmem:[%s656] ss:$4 sm:$0xff] %v595
        %669 = vst [vmem:[%s658] ss:$4 sm:$0xff] %v596
        %v670 = vld.sshfl [vmem:[#allocation1] sm:$0xff pattern:$0x73625140]
        %v671 = vld.sshfl [vmem:[#allocation1 + $0x20] sm:$0xff pattern:$0x73625140]
        %672 = vst [vmem:[#allocation1] ss:$4 sm:$0xff] %v597
        %673 = vst [vmem:[%s646] ss:$4 sm:$0xff] %v598
        %674 = vst [vmem:[%s648] ss:$4 sm:$0xff] %v599
        %675 = vst [vmem:[%s650] ss:$4 sm:$0xff] %v600
        %676 = vst [vmem:[%s652] ss:$4 sm:$0xff] %v601
        %677 = vst [vmem:[%s654] ss:$4 sm:$0xff] %v602
        %678 = vst [vmem:[%s656] ss:$4 sm:$0xff] %v603
        %679 = vst [vmem:[%s658] ss:$4 sm:$0xff] %v604
        %v680 = vld.sshfl [vmem:[#allocation1] sm:$0xff pattern:$0x73625140]
        %v681 = vld.sshfl [vmem:[#allocation1 + $0x20] sm:$0xff pattern:$0x73625140]
        %682 = vst [vmem:[#allocation1] ss:$4 sm:$0xff] %v605
        %683 = vst [vmem:[%s646] ss:$4 sm:$0xff] %v606
        %684 = vst [vmem:[%s648] ss:$4 sm:$0xff] %v607
        %685 = vst [vmem:[%s650] ss:$4 sm:$0xff] %v608
        %686 = vst [vmem:[%s652] ss:$4 sm:$0xff] %v609
        %687 = vst [vmem:[%s654] ss:$4 sm:$0xff] %v610
        %688 = vst [vmem:[%s656] ss:$4 sm:$0xff] %v611
        %689 = vst [vmem:[%s658] ss:$4 sm:$0xff] %v612
        %v690 = vld.sshfl [vmem:[#allocation1] sm:$0xff pattern:$0x73625140]
        %v691 = vld.sshfl [vmem:[#allocation1 + $0x20] sm:$0xff pattern:$0x73625140]
        %692 = vst [vmem:[#allocation1] ss:$4 sm:$0xff] %v613
        %693 = vst [vmem:[%s646] ss:$4 sm:$0xff] %v614
        %694 = vst [vmem:[%s648] ss:$4 sm:$0xff] %v615
        %695 = vst [vmem:[%s650] ss:$4 sm:$0xff] %v616
        %696 = vst [vmem:[%s652] ss:$4 sm:$0xff] %v617
        %697 = vst [vmem:[%s654] ss:$4 sm:$0xff] %v618
        %698 = vst [vmem:[%s656] ss:$4 sm:$0xff] %v619
        %699 = vst [vmem:[%s658] ss:$4 sm:$0xff] %v620
        %v700 = vld.sshfl [vmem:[#allocation1] sm:$0xff pattern:$0x73625140]
        %v701 = vld.sshfl [vmem:[#allocation1 + $0x20] sm:$0xff pattern:$0x73625140]
        %702 = vst [vmem:[#allocation1] ss:$4 sm:$0xff] %v621
        %703 = vst [vmem:[%s646] ss:$4 sm:$0xff] %v622
        %704 = vst [vmem:[%s648] ss:$4 sm:$0xff] %v623
        %705 = vst [vmem:[%s650] ss:$4 sm:$0xff] %v624
        %706 = vst [vmem:[%s652] ss:$4 sm:$0xff] %v625
        %707 = vst [vmem:[%s654] ss:$4 sm:$0xff] %v626
        %708 = vst [vmem:[%s656] ss:$4 sm:$0xff] %v627
        %709 = vst [vmem:[%s658] ss:$4 sm:$0xff] %v628
        %v710 = vld.sshfl [vmem:[#allocation1] sm:$0xff pattern:$0x73625140]
        %v711 = vld.sshfl [vmem:[#allocation1 + $0x20] sm:$0xff pattern:$0x73625140]
        %712 = vst [vmem:[#allocation1] ss:$4 sm:$0xff] %v629
        %713 = vst [vmem:[%s646] ss:$4 sm:$0xff] %v630
        %714 = vst [vmem:[%s648] ss:$4 sm:$0xff] %v631
        %715 = vst [vmem:[%s650] ss:$4 sm:$0xff] %v632
        %716 = vst [vmem:[%s652] ss:$4 sm:$0xff] %v633
        %717 = vst [vmem:[%s654] ss:$4 sm:$0xff] %v634
        %718 = vst [vmem:[%s656] ss:$4 sm:$0xff] %v635
        %719 = vst [vmem:[%s658] ss:$4 sm:$0xff] %v636
        %v720 = vld.sshfl [vmem:[#allocation1] sm:$0xff pattern:$0x73625140]
        %v721 = vld.sshfl [vmem:[#allocation1 + $0x20] sm:$0xff pattern:$0x73625140]
        %722 = vst [vmem:[#allocation1] ss:$4 sm:$0xff] %v637
        %723 = vst [vmem:[%s646] ss:$4 sm:$0xff] %v638
        %724 = vst [vmem:[%s648] ss:$4 sm:$0xff] %v639
        %725 = vst [vmem:[%s650] ss:$4 sm:$0xff] %v640
        %726 = vst [vmem:[%s652] ss:$4 sm:$0xff] %v641
        %727 = vst [vmem:[%s654] ss:$4 sm:$0xff] %v642
        %728 = vst [vmem:[%s656] ss:$4 sm:$0xff] %v643
        %729 = vst [vmem:[%s658] ss:$4 sm:$0xff] %v644
        %v730 = vld.sshfl [vmem:[#allocation1] sm:$0xff pattern:$0x73625140]
        %v731 = vld.sshfl [vmem:[#allocation1 + $0x20] sm:$0xff pattern:$0x73625140]
        %732 = vst [vmem:[%s190] sm:$0xff] %v660
        %733 = vst [vmem:[%s190 + $0x8] sm:$0xff] %v661
        %734 = vst [vmem:[%s190 + $0x10] sm:$0xff] %v670
        %735 = vst [vmem:[%s190 + $0x18] sm:$0xff] %v671
        %736 = vst [vmem:[%s190 + $0x20] sm:$0xff] %v680
        %737 = vst [vmem:[%s190 + $0x28] sm:$0xff] %v681
        %738 = vst [vmem:[%s190 + $0x30] sm:$0xff] %v690
        %739 = vst [vmem:[%s190 + $0x38] sm:$0xff] %v691
        %740 = vst [vmem:[%s190 + $0x40] sm:$0xff] %v700
        %741 = vst [vmem:[%s190 + $0x48] sm:$0xff] %v701
        %742 = vst [vmem:[%s190 + $0x50] sm:$0xff] %v710
        %743 = vst [vmem:[%s190 + $0x58] sm:$0xff] %v711
        %744 = vst [vmem:[%s190 + $0x60] sm:$0xff] %v720
        %745 = vst [vmem:[%s190 + $0x68] sm:$0xff] %v721
        %746 = vst [vmem:[%s190 + $0x70] sm:$0xff] %v730
        %747 = vst [vmem:[%s190 + $0x78] sm:$0xff] %v731
        %s748 = smul.u32 4, %s21
        %s749 = smul.u32 4, %s22
        %p750 = scmp.lt.s32.totalorder %s20, 1
        %s751 = scalar_select %p750, %s20, 1
        %p752 = scmp.lt.s32.totalorder %s748, 3
        %s753 = scalar_select %p752, %s748, 3
        %p754 = scmp.lt.s32.totalorder %s749, 3
        %s755 = scalar_select %p754, %s749, 3
        %s756 = smul.addr %s753, 4
        %s757 = sadd.s32 %s755, %s756
        %s758 = smul.addr %s751, 16
        %s759 = sadd.s32 %s757, %s758
        %s760 = smul.addr %s759, 8
        %s761 = scalar_lea.vmem %s1, %s760
        // Predicated region
        $region29: #{_unnamed_function_.1} parent=23 // pred_check
          %p762 = pneg %p86
        $region30: #{_unnamed_function_.1} parent=23 // pred_check_branch
          %764 = sbr.rel (%p762) target = $region32
        $region31: #{_unnamed_function_.1} parent=23 // pred_region
          %s765 = smul.u32 4, %s21
          %s766 = smul.u32 4, %s22
        $region32: #{_unnamed_function_.1} parent=23 // pred_fallthru
          _
      $region24: #{_unnamed_function_.1} parent=5 // pred_fallthru
        _
      %p767 = scmp.le.s32.totalorder 2, %s10
      // Predicated region
      $region33: #{_unnamed_function_.1} parent=5 // pred_check
        %p768 = pneg %p767
      $region34: #{_unnamed_function_.1} parent=5 // pred_check_branch
        %770 = sbr.rel (%p768) target = $region36
      $region35: #{_unnamed_function_.1} parent=5 // pred_region
        %s771 = ssub.s32 %s10, 2
        // Predicated region
        $region37: #{_unnamed_function_.1} parent=35 // pred_check
          %p772 = pneg %p92
        $region38: #{_unnamed_function_.1} parent=35 // pred_check_branch
          %774 = sbr.rel (%p772) target = $region40
        $region39: #{_unnamed_function_.1} parent=35 // pred_region
          %s775 = smul.u32 4, %s24
          %s776 = smul.u32 4, %s25
          %p777 = scmp.lt.s32.totalorder %s23, 1
          %s778 = scalar_select %p777, %s23, 1
          %p779 = scmp.lt.s32.totalorder %s775, 3
          %s780 = scalar_select %p779, %s775, 3
          %p781 = scmp.lt.s32.totalorder %s776, 3
          %s782 = scalar_select %p781, %s776, 3
          %s783 = smul.addr %s780, 4
          %s784 = sadd.s32 %s782, %s783
          %s785 = smul.addr %s778, 16
          %s786 = sadd.s32 %s784, %s785
          %s787 = smul.addr %s786, 8
          %s788 = scalar_lea.vmem %s1, %s787
        $region40: #{_unnamed_function_.1} parent=35 // pred_fallthru
          _
      $region36: #{_unnamed_function_.1} parent=5 // pred_fallthru
        _
    $region6: #{_unnamed_function_.1} parent=1 // loop_footer
      %s14 = sadd.s32 1, %s10
    $region7: #{_unnamed_function_.1} parent=1 // loop_footer_branch
      %9 = sbr.rel target = $region3
    $region8: #{_unnamed_function_.1} parent=1 // loop_exit
      _
    %789 = vsyncpa [#allocation3], 1
    %s790 = scalar_lea.sflag [#allocation3], 1
    %791 = vsyncpa %s790, 1

</llo_original>
